<compile_context>
chip_gen: v7x
topology: tpu7x:2x2x1
jax: 0.10.0
libtpu: 0.0.40
codegen_flags: <defaults>
</compile_context>

<pallas_src>
import functools
import numpy as np
import jax
import jax.numpy as jnp
from jax.experimental import pallas as pl
from jax.experimental.pallas import tpu as pltpu

# ----------------------- model_cfg-equivalent constants -----------------------
NUM_CLASS = 1
CODE_SIZE = 7
NUM_DIR_BINS = 2
DIR_OFFSET = 0.78539
DIR_LIMIT_OFFSET = 0.0
ANCHOR_SIZES = [[3.9, 1.6, 1.56]]
ANCHOR_ROTATIONS = [0.0, 1.5707963]
ANCHOR_HEIGHTS = [-1.78]
POINT_CLOUD_RANGE = [0.0, -40.0, -3.0, 15.0, -25.0, 1.0]

SUB = 8  # sublane alignment


def _round_up(n, m):
    return -(-n // m) * m


# ----------------------------- anchor generation ------------------------------
def generate_anchors_np(fm_size_xy, anchor_range, sizes, rotations, heights):
    """Mirrors AnchorGenerator.generate_anchors for a single class config."""
    nx, ny = fm_size_xy
    x_stride = (anchor_range[3] - anchor_range[0]) / (nx - 1)
    y_stride = (anchor_range[4] - anchor_range[1]) / (ny - 1)
    x_shifts = np.arange(anchor_range[0], anchor_range[3] + 1e-5, x_stride,
                         dtype=np.float32)
    y_shifts = np.arange(anchor_range[1], anchor_range[4] + 1e-5, y_stride,
                         dtype=np.float32)
    z_shifts = np.array(heights, dtype=np.float32)
    sizes = np.array(sizes, dtype=np.float32)          # (ns, 3)
    rotations = np.array(rotations, dtype=np.float32)  # (nr,)

    xs, ys, zs = np.meshgrid(x_shifts, y_shifts, z_shifts, indexing="ij")
    anchors = np.stack([xs, ys, zs], axis=-1)          # (nx, ny, nz, 3)
    nx_, ny_, nz_ = xs.shape
    ns, nr = sizes.shape[0], rotations.shape[0]

    anchors = np.tile(anchors[:, :, :, None, :], (1, 1, 1, ns, 1))
    size_t = np.tile(sizes.reshape(1, 1, 1, ns, 3), (nx_, ny_, nz_, 1, 1))
    anchors = np.concatenate([anchors, size_t], axis=-1)             # (..., 6)
    anchors = np.tile(anchors[:, :, :, :, None, :], (1, 1, 1, 1, nr, 1))
    rot_t = np.tile(rotations.reshape(1, 1, 1, 1, nr, 1), (nx_, ny_, nz_, ns, 1, 1))
    anchors = np.concatenate([anchors, rot_t], axis=-1)              # (..., 7)
    anchors = anchors.transpose(2, 1, 0, 3, 4, 5).copy()  # (nz, ny, nx, ns, nr, 7)
    anchors[..., 2] += anchors[..., 5] / 2.0
    return anchors


# ------------------------------ fused Pallas kernel ----------------------------
def _fused_head_decode_kernel(x_ref, w_ref, b_ref, anch_ref, cls_ref, box_ref, *,
                              ap, cls_rows, num_dir_bins, dir_offset,
                              dir_limit_offset):
    """One matmul for all three 1x1-conv heads + in-register box decode.

    x_ref   : (1, C, tm) bf16   pixel tile, channels on sublanes, pixels on lanes
    w_ref   : (R, C)     bf16   fused [cls | box(field-major) | dir(bin-major)]
                                weights; every section zero-padded to 8-row blocks
    b_ref   : (R, 1)     f32    fused bias (same padded layout)
    anch_ref: (7*ap, tm) f32    anchors, field-major 8-aligned rows
    cls_ref : (1, cls_rows, tm) f32
    box_ref : (1, 7*ap, tm)     f32 decoded boxes, field-major 8-aligned rows
    """
    box_rows = CODE_SIZE * ap

    x = x_ref[0]                                                   # (C, tm) bf16
    out = (jnp.dot(w_ref[...], x, preferred_element_type=jnp.float32)
           + b_ref[...])                                           # (R, tm) f32

    # classification logits: aligned, lane-dense store (channel order a*nc + c)
    cls_ref[0] = out[0:cls_rows].astype(cls_ref.dtype)

    box = out[cls_rows:cls_rows + box_rows]                        # (7*ap, tm)
    dirp = out[cls_rows + box_rows:]                               # (D*ap, tm)
    anch = anch_ref[...]                                           # (7*ap, tm)

    # all slices below are at multiples of ap (>= 8) -> no sublane shuffles
    xa, ya, za = anch[0 * ap:1 * ap], anch[1 * ap:2 * ap], anch[2 * ap:3 * ap]
    dxa, dya, dza, ra = (anch[3 * ap:4 * ap], anch[4 * ap:5 * ap],
                         anch[5 * ap:6 * ap], anch[6 * ap:7 * ap])
    xt, yt, zt = box[0 * ap:1 * ap], box[1 * ap:2 * ap], box[2 * ap:3 * ap]
    dxt, dyt, dzt, rt = (box[3 * ap:4 * ap], box[4 * ap:5 * ap],
                         box[5 * ap:6 * ap], box[6 * ap:7 * ap])

    # ResidualCoder.decode_torch, vectorized over all anchors (sqrt/exp -> EUP).
    diag = jnp.sqrt(dxa * dxa + dya * dya)
    xg = xt * diag + xa
    yg = yt * diag + ya
    zg = zt * dza + za
    dxg = jnp.exp(dxt) * dxa
    dyg = jnp.exp(dyt) * dya
    dzg = jnp.exp(dzt) * dza
    rg = rt + ra

    # argmax over direction bins (strict '>' => first-max, matches jnp.argmax).
    best_val = dirp[0:ap]
    best_idx = jnp.zeros_like(best_val)
    for i in range(1, num_dir_bins):
        di = dirp[i * ap:(i + 1) * ap]
        c = di > best_val
        best_idx = jnp.where(c, np.float32(i), best_idx)
        best_val = jnp.where(c, di, best_val)

    period = np.float32(2.0 * np.pi / num_dir_bins)
    inv_period = np.float32(num_dir_bins / (2.0 * np.pi))
    off = np.float32(dir_offset)
    lim = np.float32(dir_limit_offset)
    val = rg - off
    rot = val - jnp.floor(val * inv_period + lim) * period
    rg_final = rot + off + period * best_idx

    # direct aligned per-field stores (no concatenate / repack)
    box_ref[0, 0 * ap:1 * ap, :] = xg.astype(box_ref.dtype)
    box_ref[0, 1 * ap:2 * ap, :] = yg.astype(box_ref.dtype)
    box_ref[0, 2 * ap:3 * ap, :] = zg.astype(box_ref.dtype)
    box_ref[0, 3 * ap:4 * ap, :] = dxg.astype(box_ref.dtype)
    box_ref[0, 4 * ap:5 * ap, :] = dyg.astype(box_ref.dtype)
    box_ref[0, 5 * ap:6 * ap, :] = dzg.astype(box_ref.dtype)
    box_ref[0, 6 * ap:7 * ap, :] = rg_final.astype(box_ref.dtype)


# -------------------------------- tiling planner --------------------------------
def _plan_tiling(B, M, max_tm=2048):
    """Pick tm (multiple of 128, <= max_tm) and M_pad (multiple of tm).

    Never falls back to tm=M; at real BEV sizes (M not a 128-multiple) the
    wrapper pads M instead.  With B==1, caps tm so the M axis has >=2 grid steps
    (v7x megacore: 2 TensorCores per chip).
    """
    max_tm = max(128, max_tm - max_tm % 128)
    tm = min(max_tm, _round_up(M, 128))
    if B == 1 and _round_up(M, 128) // 128 >= 2:
        while _round_up(M, tm) // tm < 2 and tm > 128:
            tm -= 128
    M_pad = _round_up(M, tm)
    return tm, M_pad


def _vmem_limit_bytes(C, tm, o_total_pad, box_rows, cls_rows):
    """Explicit scoped-VMEM budget: 2x (double buffer) each pipelined tile."""
    lane = lambda n: _round_up(max(n, 1), 128)
    sub = lambda n: _round_up(max(n, 1), 8)
    per_buf = (sub(C) * tm * 2 +                   # x tile (bf16)
               sub(o_total_pad) * lane(C) * 2 +    # fused weights (bf16)
               sub(o_total_pad) * lane(1) * 4 +    # fused bias (f32)
               box_rows * tm * 4 +                 # anchors (f32)
               cls_rows * tm * 4 +                 # cls out (f32)
               box_rows * tm * 4)                  # box out (f32)
    need = 2 * per_buf
    # floor at 32 MiB (cheap everywhere), cap at 48 MiB (safe on v7x's 64 MiB VMEM)
    return int(min(max(2 * need, 32 << 20), 48 << 20))


def fused_head_decode(x_bcm, w_all, b_all, anch_fm, *, ap, cls_rows,
                      num_dir_bins, tm, vmem_limit_bytes):
    B, C, M_pad = x_bcm.shape
    o_total_pad = w_all.shape[0]
    box_rows = CODE_SIZE * ap
    assert M_pad % tm == 0
    # M-tiles outer, batch inner: the anchor tile (depends only on i) stays
    # resident in VMEM across the whole batch loop.
    grid = (M_pad // tm, B)

    kernel = functools.partial(
        _fused_head_decode_kernel, ap=ap, cls_rows=cls_rows,
        num_dir_bins=num_dir_bins, dir_offset=DIR_OFFSET,
        dir_limit_offset=DIR_LIMIT_OFFSET)

    cls_out, box_out = pl.pallas_call(
        kernel,
        out_shape=(jax.ShapeDtypeStruct((B, cls_rows, M_pad), jnp.float32),
                   jax.ShapeDtypeStruct((B, box_rows, M_pad), jnp.float32)),
        grid=grid,
        in_specs=[pl.BlockSpec((1, C, tm), lambda i, b: (b, 0, i)),
                  pl.BlockSpec((o_total_pad, C), lambda i, b: (0, 0)),
                  pl.BlockSpec((o_total_pad, 1), lambda i, b: (0, 0)),
                  pl.BlockSpec((box_rows, tm), lambda i, b: (0, i))],
        out_specs=[pl.BlockSpec((1, cls_rows, tm), lambda i, b: (b, 0, i)),
                   pl.BlockSpec((1, box_rows, tm), lambda i, b: (b, 0, i))],
        compiler_params=pltpu.CompilerParams(
            dimension_semantics=("parallel", "parallel"),
            vmem_limit_bytes=vmem_limit_bytes),
    )(x_bcm, w_all, b_all, anch_fm)
    return cls_out, box_out


# ------------------------------- module wrapper --------------------------------
def anchor_head_single_forward(bev_features_nchw, params, anchors_flat, *,
                               max_tm=2048, return_field_major=False):
    """Inference-path forward of AnchorHeadSingle.

    bev_features_nchw: [B, C, H, W] float32 (PyTorch NCHW convention).
    Returns dict with 'cls_preds_for_testing' [B, N, num_class]
    and 'box_preds_for_testing' [B, N, 7], N = H*W*num_anchors_per_location.
    With return_field_major=True the lane-dense kernel layout is returned
    directly (for downstream consumers that fuse the reorder).
    """
    B, C, H, W = bev_features_nchw.shape
    A = params["num_anchors_per_location"]
    M = H * W
    N = M * A
    o_cls = A * NUM_CLASS

    ap = _round_up(A, SUB)            # anchors-per-location padded to 8 sublanes
    cls_rows = _round_up(o_cls, SUB)
    box_rows = CODE_SIZE * ap
    dir_rows = NUM_DIR_BINS * ap
    o_total_pad = cls_rows + box_rows + dir_rows

    tm, M_pad = _plan_tiling(B, M, max_tm=max_tm)

    # NCHW -> [B, C, M]: pure reshape (no transpose); pad M; halve the dominant
    # HBM stream with bf16 (matmul still accumulates in f32).
    x_bcm = bev_features_nchw.reshape(B, C, M)
    x_bcm = jnp.pad(x_bcm, ((0, 0), (0, 0), (0, M_pad - M))).astype(jnp.bfloat16)

    # Fused, 8-row-aligned weights / bias / anchors (tiny, built at trace time).
    #   rows [0, cls_rows)              : cls head, conv-channel order a*nc + c
    #   rows cls_rows + f*ap + [0, A)   : box head field f (field-major)
    #   rows cls_rows + 7*ap + d*ap + a : dir head bin d
    def pad_rows(x, rows):
        return jnp.pad(x, ((0, rows - x.shape[0]),) + ((0, 0),) * (x.ndim - 1))

    wc = pad_rows(params["wc"].T, cls_rows)                              # (cls_rows, C)
    bc = pad_rows(params["bc"].T, cls_rows)                              # (cls_rows, 1)
    wb = params["wb"].T.reshape(A, CODE_SIZE, C).transpose(1, 0, 2)      # (7, A, C)
    wb = jnp.pad(wb, ((0, 0), (0, ap - A), (0, 0))).reshape(box_rows, C)
    bb = params["bb"].T.reshape(A, CODE_SIZE, 1).transpose(1, 0, 2)
    bb = jnp.pad(bb, ((0, 0), (0, ap - A), (0, 0))).reshape(box_rows, 1)
    wd = params["wd"].T.reshape(A, NUM_DIR_BINS, C).transpose(1, 0, 2)   # (D, A, C)
    wd = jnp.pad(wd, ((0, 0), (0, ap - A), (0, 0))).reshape(dir_rows, C)
    bd = params["bd"].T.reshape(A, NUM_DIR_BINS, 1).transpose(1, 0, 2)
    bd = jnp.pad(bd, ((0, 0), (0, ap - A), (0, 0))).reshape(dir_rows, 1)

    w_all = jnp.concatenate([wc, wb, wd], axis=0).astype(jnp.bfloat16)   # (R, C)
    b_all = jnp.concatenate([bc, bb, bd], axis=0).astype(jnp.float32)    # (R, 1)

    # anchors [N, 7] (n = m*A + a) -> field-major, 8-row aligned [7*ap, M_pad]
    anch = anchors_flat.reshape(M, A, CODE_SIZE).transpose(2, 1, 0)      # (7, A, M)
    anch = jnp.pad(anch, ((0, 0), (0, ap - A), (0, M_pad - M)))
    anch_fm = anch.reshape(box_rows, M_pad).astype(jnp.float32)

    vmem_limit = _vmem_limit_bytes(C, tm, o_total_pad, box_rows, cls_rows)

    cls_out, box_out = fused_head_decode(
        x_bcm, w_all, b_all, anch_fm, ap=ap, cls_rows=cls_rows,
        num_dir_bins=NUM_DIR_BINS, tm=tm, vmem_limit_bytes=vmem_limit)

    if return_field_major:
        # lane-dense layout for a fused downstream consumer (no HBM round trip)
        return {"cls_preds_for_testing": cls_out[:, :o_cls, :M],
                "box_preds_for_testing":
                    box_out.reshape(B, CODE_SIZE, ap, M_pad)[:, :, :A, :M]}

    # Match the PyTorch module layout ([B, N, num_class] / [B, N, 7]).
    cls_preds = jnp.transpose(cls_out[:, :o_cls, :M], (0, 2, 1)) \
                   .reshape(B, N, NUM_CLASS).astype(jnp.float32)
    box_preds = jnp.transpose(
        box_out.reshape(B, CODE_SIZE, ap, M_pad)[:, :, :A, :M],
        (0, 3, 2, 1)).reshape(B, N, CODE_SIZE)
    return {"cls_preds_for_testing": cls_preds,
            "box_preds_for_testing": box_preds}


# ------------------------------- pure-JAX reference ----------------------------
def reference_forward(bev_features_nchw, params, anchors_flat):
    B, C, H, W = bev_features_nchw.shape
    A = params["num_anchors_per_location"]
    N = H * W * A
    x = jnp.transpose(bev_features_nchw, (0, 2, 3, 1)).reshape(B * H * W, C)
    x = x.astype(jnp.bfloat16)

    def head(w, b):
        return jnp.dot(x, w.astype(jnp.bfloat16),
                       preferred_element_type=jnp.float32) + b

    cls = head(params["wc"], params["bc"]).reshape(B, N, NUM_CLASS)
    box = head(params["wb"], params["bb"]).reshape(B, N, CODE_SIZE)
    dirp = head(params["wd"], params["bd"]).reshape(B, N, NUM_DIR_BINS)

    a = jnp.broadcast_to(anchors_flat[None], (B, N, CODE_SIZE))
    xa, ya, za, dxa, dya, dza, ra = jnp.split(a, 7, axis=-1)
    xt, yt, zt, dxt, dyt, dzt, rt = jnp.split(box, 7, axis=-1)
    diag = jnp.sqrt(dxa ** 2 + dya ** 2)
    xg = xt * diag + xa
    yg = yt * diag + ya
    zg = zt * dza + za
    dxg = jnp.exp(dxt) * dxa
    dyg = jnp.exp(dyt) * dya
    dzg = jnp.exp(dzt) * dza
    rg = rt + ra
    dir_label = jnp.argmax(dirp, axis=-1).astype(jnp.float32)[..., None]
    period = np.float32(2.0 * np.pi / NUM_DIR_BINS)
    inv_period = np.float32(NUM_DIR_BINS / (2.0 * np.pi))
    val = rg - np.float32(DIR_OFFSET)
    rot = val - jnp.floor(val * inv_period + np.float32(DIR_LIMIT_OFFSET)) * period
    rg = rot + np.float32(DIR_OFFSET) + period * dir_label
    boxes = jnp.concatenate([xg, yg, zg, dxg, dyg, dzg, rg], axis=-1)
    return cls.astype(jnp.float32), boxes


# ----------------------------------- main --------------------------------------
if __name__ == "__main__":
    B, C, H, W = 2, 32, 16, 16
    num_apl = len(ANCHOR_SIZES) * len(ANCHOR_ROTATIONS) * len(ANCHOR_HEIGHTS)
    o_cls = num_apl * NUM_CLASS
    o_box = num_apl * CODE_SIZE
    o_dir = num_apl * NUM_DIR_BINS

    # anchors (single class config), flattened to [N, 7], n = (h*W + w)*num_apl + a
    anchors_np = generate_anchors_np((W, H), POINT_CLOUD_RANGE, ANCHOR_SIZES,
                                     ANCHOR_ROTATIONS, ANCHOR_HEIGHTS)
    anchors_flat = jnp.asarray(anchors_np.reshape(-1, CODE_SIZE), jnp.float32)
    assert anchors_flat.shape[0] == H * W * num_apl

    # deterministic parameter init (weights stored as [C_in, C_out])
    key = jax.random.PRNGKey(0)
    k1, k2, k3, k4, k5 = jax.random.split(key, 5)
    pi = 0.01
    params = {
        "num_anchors_per_location": num_apl,
        "wc": 0.05 * jax.random.normal(k1, (C, o_cls), jnp.float32),
        "bc": jnp.full((1, o_cls), -np.log((1 - pi) / pi), jnp.float32),
        "wb": 0.001 * jax.random.normal(k2, (C, o_box), jnp.float32),
        "bb": jnp.zeros((1, o_box), jnp.float32),
        "wd": 0.05 * jax.random.normal(k3, (C, o_dir), jnp.float32),
        "bd": 0.05 * jax.random.normal(k4, (1, o_dir), jnp.float32),
    }

    bev_features = jax.random.normal(k5, (B, C, H, W), jnp.float32)

    out = anchor_head_single_forward(bev_features, params, anchors_flat)
    jax.block_until_ready(out)

    ref_cls, ref_boxes = reference_forward(bev_features, params, anchors_flat)
    np.testing.assert_allclose(np.asarray(out["cls_preds_for_testing"]),
                               np.asarray(ref_cls), rtol=1e-4, atol=2e-4)
    np.testing.assert_allclose(np.asarray(out["box_preds_for_testing"]),
                               np.asarray(ref_boxes), rtol=1e-4, atol=2e-4)
    print("KERNEL_OK")
</pallas_src>

<mosaic_0001>
module attributes {stable_mosaic.version = 11 : i64} {
  func.func @_fused_head_decode_kernel(%arg0: i32, %arg1: i32, %arg2: memref<1x32x256xbf16, #tpu.memory_space<vmem>>, %arg3: memref<80x32xbf16, #tpu.memory_space<vmem>>, %arg4: memref<80x1xf32, #tpu.memory_space<vmem>>, %arg5: memref<56x256xf32, #tpu.memory_space<vmem>>, %arg6: memref<1x8x256xf32, #tpu.memory_space<vmem>>, %arg7: memref<1x56x256xf32, #tpu.memory_space<vmem>>) attributes {dimension_semantics = [#tpu.dimension_semantics<parallel>, #tpu.dimension_semantics<parallel>], iteration_bounds = array<i64: 1, 2>, scalar_prefetch = 0 : i64, scratch_operands = 0 : i64, tpu.core_type = #tpu.core_type<tc>, window_params = [{transform_indices = @transform_0, window_bounds = array<i64: 1, 32, 256>}, {pipeline_mode = #tpu.pipeline_mode<synchronous>, transform_indices = @transform_1, window_bounds = array<i64: 80, 32>}, {pipeline_mode = #tpu.pipeline_mode<synchronous>, transform_indices = @transform_2, window_bounds = array<i64: 80, 1>}, {transform_indices = @transform_3, window_bounds = array<i64: 56, 256>}, {transform_indices = @transform_4, window_bounds = array<i64: 1, 8, 256>}, {transform_indices = @transform_5, window_bounds = array<i64: 1, 56, 256>}]} {
    %c0 = arith.constant 0 : index
    %c0_0 = arith.constant 0 : index
    %c0_1 = arith.constant 0 : index
    %0 = vector.load %arg2[%c0, %c0_0, %c0_1] : memref<1x32x256xbf16, #tpu.memory_space<vmem>>, vector<1x32x256xbf16>
    %1 = vector.shape_cast %0 : vector<1x32x256xbf16> to vector<32x256xbf16>
    %c0_2 = arith.constant 0 : index
    %c0_3 = arith.constant 0 : index
    %2 = vector.load %arg3[%c0_2, %c0_3] : memref<80x32xbf16, #tpu.memory_space<vmem>>, vector<80x32xbf16>
    %cst = arith.constant dense<0.000000e+00> : vector<80x256xf32>
    %3 = tpu.matmul %2, %1, %cst {dimension_numbers = #tpu.dot_dimension_numbers<[1], [0], [0], [1], [0, 0, 1, 1], [], []>} : vector<80x32xbf16>, vector<32x256xbf16>, vector<80x256xf32> -> vector<80x256xf32>
    %c0_4 = arith.constant 0 : index
    %c0_5 = arith.constant 0 : index
    %4 = vector.load %arg4[%c0_4, %c0_5] : memref<80x1xf32, #tpu.memory_space<vmem>>, vector<80x1xf32>
    %5 = vector.broadcast %4 : vector<80x1xf32> to vector<80x256xf32>
    %6 = arith.addf %3, %5 : vector<80x256xf32>
    %7 = vector.extract_strided_slice %6 {offsets = [0, 0], sizes = [8, 256], strides = [1, 1]} : vector<80x256xf32> to vector<8x256xf32>
    %c0_6 = arith.constant 0 : index
    %c0_7 = arith.constant 0 : index
    %c0_8 = arith.constant 0 : index
    %8 = vector.load %arg6[%c0_6, %c0_7, %c0_8] : memref<1x8x256xf32, #tpu.memory_space<vmem>>, vector<1x8x256xf32>
    %9 = vector.shape_cast %8 : vector<1x8x256xf32> to vector<8x256xf32>
    %10 = vector.shape_cast %7 : vector<8x256xf32> to vector<1x8x256xf32>
    tpu.vector_store %arg6[%c0_6, %c0_7, %c0_8], %10 {strides = array<i32>} : memref<1x8x256xf32, #tpu.memory_space<vmem>>, vector<1x8x256xf32>,
    %11 = vector.extract_strided_slice %6 {offsets = [8, 0], sizes = [56, 256], strides = [1, 1]} : vector<80x256xf32> to vector<56x256xf32>
    %12 = vector.extract_strided_slice %6 {offsets = [64, 0], sizes = [16, 256], strides = [1, 1]} : vector<80x256xf32> to vector<16x256xf32>
    %c0_9 = arith.constant 0 : index
    %c0_10 = arith.constant 0 : index
    %13 = vector.load %arg5[%c0_9, %c0_10] : memref<56x256xf32, #tpu.memory_space<vmem>>, vector<56x256xf32>
    %14 = vector.extract_strided_slice %13 {offsets = [0, 0], sizes = [8, 256], strides = [1, 1]} : vector<56x256xf32> to vector<8x256xf32>
    %15 = vector.extract_strided_slice %13 {offsets = [8, 0], sizes = [8, 256], strides = [1, 1]} : vector<56x256xf32> to vector<8x256xf32>
    %16 = vector.extract_strided_slice %13 {offsets = [16, 0], sizes = [8, 256], strides = [1, 1]} : vector<56x256xf32> to vector<8x256xf32>
    %17 = vector.extract_strided_slice %13 {offsets = [24, 0], sizes = [8, 256], strides = [1, 1]} : vector<56x256xf32> to vector<8x256xf32>
    %18 = vector.extract_strided_slice %13 {offsets = [32, 0], sizes = [8, 256], strides = [1, 1]} : vector<56x256xf32> to vector<8x256xf32>
    %19 = vector.extract_strided_slice %13 {offsets = [40, 0], sizes = [8, 256], strides = [1, 1]} : vector<56x256xf32> to vector<8x256xf32>
    %20 = vector.extract_strided_slice %13 {offsets = [48, 0], sizes = [8, 256], strides = [1, 1]} : vector<56x256xf32> to vector<8x256xf32>
    %21 = vector.extract_strided_slice %11 {offsets = [0, 0], sizes = [8, 256], strides = [1, 1]} : vector<56x256xf32> to vector<8x256xf32>
    %22 = vector.extract_strided_slice %11 {offsets = [8, 0], sizes = [8, 256], strides = [1, 1]} : vector<56x256xf32> to vector<8x256xf32>
    %23 = vector.extract_strided_slice %11 {offsets = [16, 0], sizes = [8, 256], strides = [1, 1]} : vector<56x256xf32> to vector<8x256xf32>
    %24 = vector.extract_strided_slice %11 {offsets = [24, 0], sizes = [8, 256], strides = [1, 1]} : vector<56x256xf32> to vector<8x256xf32>
    %25 = vector.extract_strided_slice %11 {offsets = [32, 0], sizes = [8, 256], strides = [1, 1]} : vector<56x256xf32> to vector<8x256xf32>
    %26 = vector.extract_strided_slice %11 {offsets = [40, 0], sizes = [8, 256], strides = [1, 1]} : vector<56x256xf32> to vector<8x256xf32>
    %27 = vector.extract_strided_slice %11 {offsets = [48, 0], sizes = [8, 256], strides = [1, 1]} : vector<56x256xf32> to vector<8x256xf32>
    %28 = arith.mulf %17, %17 : vector<8x256xf32>
    %29 = arith.mulf %18, %18 : vector<8x256xf32>
    %30 = arith.addf %28, %29 : vector<8x256xf32>
    %31 = math.sqrt %30 : vector<8x256xf32>
    %32 = arith.mulf %21, %31 : vector<8x256xf32>
    %33 = arith.addf %32, %14 : vector<8x256xf32>
    %34 = arith.mulf %22, %31 : vector<8x256xf32>
    %35 = arith.addf %34, %15 : vector<8x256xf32>
    %36 = arith.mulf %23, %19 : vector<8x256xf32>
    %37 = arith.addf %36, %16 : vector<8x256xf32>
    %38 = math.exp %24 : vector<8x256xf32>
    %39 = arith.mulf %38, %17 : vector<8x256xf32>
    %40 = math.exp %25 : vector<8x256xf32>
    %41 = arith.mulf %40, %18 : vector<8x256xf32>
    %42 = math.exp %26 : vector<8x256xf32>
    %43 = arith.mulf %42, %19 : vector<8x256xf32>
    %44 = arith.addf %27, %20 : vector<8x256xf32>
    %45 = vector.extract_strided_slice %12 {offsets = [0, 0], sizes = [8, 256], strides = [1, 1]} : vector<16x256xf32> to vector<8x256xf32>
    %cst_11 = arith.constant 0.000000e+00 : f32
    %46 = vector.broadcast %cst_11 : f32 to vector<8x256xf32>
    %47 = vector.extract_strided_slice %12 {offsets = [8, 0], sizes = [8, 256], strides = [1, 1]} : vector<16x256xf32> to vector<8x256xf32>
    %48 = arith.cmpf ogt, %47, %45 : vector<8x256xf32>
    %cst_12 = arith.constant 1.000000e+00 : f32
    %49 = vector.broadcast %cst_12 : f32 to vector<8x256xf32>
    %50 = arith.select %48, %49, %46 : vector<8x256xi1>, vector<8x256xf32>
    %cst_13 = arith.constant 7.853900e-01 : f32
    %51 = vector.broadcast %cst_13 : f32 to vector<8x256xf32>
    %52 = arith.subf %44, %51 : vector<8x256xf32>
    %cst_14 = arith.constant 0.318309873 : f32
    %53 = vector.broadcast %cst_14 : f32 to vector<8x256xf32>
    %54 = arith.mulf %52, %53 : vector<8x256xf32>
    %cst_15 = arith.constant 0.000000e+00 : f32
    %55 = vector.broadcast %cst_15 : f32 to vector<8x256xf32>
    %56 = arith.addf %54, %55 : vector<8x256xf32>
    %57 = math.floor %56 : vector<8x256xf32>
    %cst_16 = arith.constant 3.14159274 : f32
    %58 = vector.broadcast %cst_16 : f32 to vector<8x256xf32>
    %59 = arith.mulf %57, %58 : vector<8x256xf32>
    %60 = arith.subf %52, %59 : vector<8x256xf32>
    %cst_17 = arith.constant 7.853900e-01 : f32
    %61 = vector.broadcast %cst_17 : f32 to vector<8x256xf32>
    %62 = arith.addf %60, %61 : vector<8x256xf32>
    %cst_18 = arith.constant 3.14159274 : f32
    %63 = vector.broadcast %cst_18 : f32 to vector<8x256xf32>
    %64 = arith.mulf %63, %50 : vector<8x256xf32>
    %65 = arith.addf %62, %64 : vector<8x256xf32>
    %c0_19 = arith.constant 0 : index
    %c0_20 = arith.constant 0 : index
    %c0_21 = arith.constant 0 : index
    %66 = vector.load %arg7[%c0_19, %c0_20, %c0_21] : memref<1x56x256xf32, #tpu.memory_space<vmem>>, vector<1x8x256xf32>
    %67 = vector.shape_cast %66 : vector<1x8x256xf32> to vector<8x256xf32>
    %68 = vector.shape_cast %33 : vector<8x256xf32> to vector<1x8x256xf32>
    tpu.vector_store %arg7[%c0_19, %c0_20, %c0_21], %68 {strides = array<i32>} : memref<1x56x256xf32, #tpu.memory_space<vmem>>, vector<1x8x256xf32>,
    %c0_22 = arith.constant 0 : index
    %c8 = arith.constant 8 : index
    %c0_23 = arith.constant 0 : index
    %69 = vector.load %arg7[%c0_22, %c8, %c0_23] : memref<1x56x256xf32, #tpu.memory_space<vmem>>, vector<1x8x256xf32>
    %70 = vector.shape_cast %69 : vector<1x8x256xf32> to vector<8x256xf32>
    %71 = vector.shape_cast %35 : vector<8x256xf32> to vector<1x8x256xf32>
    tpu.vector_store %arg7[%c0_22, %c8, %c0_23], %71 {strides = array<i32>} : memref<1x56x256xf32, #tpu.memory_space<vmem>>, vector<1x8x256xf32>,
    %c0_24 = arith.constant 0 : index
    %c16 = arith.constant 16 : index
    %c0_25 = arith.constant 0 : index
    %72 = vector.load %arg7[%c0_24, %c16, %c0_25] : memref<1x56x256xf32, #tpu.memory_space<vmem>>, vector<1x8x256xf32>
    %73 = vector.shape_cast %72 : vector<1x8x256xf32> to vector<8x256xf32>
    %74 = vector.shape_cast %37 : vector<8x256xf32> to vector<1x8x256xf32>
    tpu.vector_store %arg7[%c0_24, %c16, %c0_25], %74 {strides = array<i32>} : memref<1x56x256xf32, #tpu.memory_space<vmem>>, vector<1x8x256xf32>,
    %c0_26 = arith.constant 0 : index
    %c24 = arith.constant 24 : index
    %c0_27 = arith.constant 0 : index
    %75 = vector.load %arg7[%c0_26, %c24, %c0_27] : memref<1x56x256xf32, #tpu.memory_space<vmem>>, vector<1x8x256xf32>
    %76 = vector.shape_cast %75 : vector<1x8x256xf32> to vector<8x256xf32>
    %77 = vector.shape_cast %39 : vector<8x256xf32> to vector<1x8x256xf32>
    tpu.vector_store %arg7[%c0_26, %c24, %c0_27], %77 {strides = array<i32>} : memref<1x56x256xf32, #tpu.memory_space<vmem>>, vector<1x8x256xf32>,
    %c0_28 = arith.constant 0 : index
    %c32 = arith.constant 32 : index
    %c0_29 = arith.constant 0 : index
    %78 = vector.load %arg7[%c0_28, %c32, %c0_29] : memref<1x56x256xf32, #tpu.memory_space<vmem>>, vector<1x8x256xf32>
    %79 = vector.shape_cast %78 : vector<1x8x256xf32> to vector<8x256xf32>
    %80 = vector.shape_cast %41 : vector<8x256xf32> to vector<1x8x256xf32>
    tpu.vector_store %arg7[%c0_28, %c32, %c0_29], %80 {strides = array<i32>} : memref<1x56x256xf32, #tpu.memory_space<vmem>>, vector<1x8x256xf32>,
    %c0_30 = arith.constant 0 : index
    %c40 = arith.constant 40 : index
    %c0_31 = arith.constant 0 : index
    %81 = vector.load %arg7[%c0_30, %c40, %c0_31] : memref<1x56x256xf32, #tpu.memory_space<vmem>>, vector<1x8x256xf32>
    %82 = vector.shape_cast %81 : vector<1x8x256xf32> to vector<8x256xf32>
    %83 = vector.shape_cast %43 : vector<8x256xf32> to vector<1x8x256xf32>
    tpu.vector_store %arg7[%c0_30, %c40, %c0_31], %83 {strides = array<i32>} : memref<1x56x256xf32, #tpu.memory_space<vmem>>, vector<1x8x256xf32>,
    %c0_32 = arith.constant 0 : index
    %c48 = arith.constant 48 : index
    %c0_33 = arith.constant 0 : index
    %84 = vector.load %arg7[%c0_32, %c48, %c0_33] : memref<1x56x256xf32, #tpu.memory_space<vmem>>, vector<1x8x256xf32>
    %85 = vector.shape_cast %84 : vector<1x8x256xf32> to vector<8x256xf32>
    %86 = vector.shape_cast %65 : vector<8x256xf32> to vector<1x8x256xf32>
    tpu.vector_store %arg7[%c0_32, %c48, %c0_33], %86 {strides = array<i32>} : memref<1x56x256xf32, #tpu.memory_space<vmem>>, vector<1x8x256xf32>,
    return
  }
  func.func @transform_0(%arg0: i32, %arg1: i32) -> (i32, i32, i32) {
    %c0_i32 = arith.constant 0 : i32
    %c0_i32_0 = arith.constant 0 : i32
    return %arg1, %c0_i32, %arg0 : i32, i32, i32
  }
  func.func @transform_1(%arg0: i32, %arg1: i32) -> (i32, i32) {
    %c0_i32 = arith.constant 0 : i32
    %c0_i32_0 = arith.constant 0 : i32
    %c0_i32_1 = arith.constant 0 : i32
    return %c0_i32, %c0_i32_0 : i32, i32
  }
  func.func @transform_2(%arg0: i32, %arg1: i32) -> (i32, i32) {
    %c0_i32 = arith.constant 0 : i32
    %c0_i32_0 = arith.constant 0 : i32
    %c0_i32_1 = arith.constant 0 : i32
    return %c0_i32, %c0_i32_0 : i32, i32
  }
  func.func @transform_3(%arg0: i32, %arg1: i32) -> (i32, i32) {
    %c0_i32 = arith.constant 0 : i32
    %c0_i32_0 = arith.constant 0 : i32
    return %c0_i32, %arg0 : i32, i32
  }
  func.func @transform_4(%arg0: i32, %arg1: i32) -> (i32, i32, i32) {
    %c0_i32 = arith.constant 0 : i32
    %c0_i32_0 = arith.constant 0 : i32
    return %arg1, %c0_i32, %arg0 : i32, i32, i32
  }
  func.func @transform_5(%arg0: i32, %arg1: i32) -> (i32, i32, i32) {
    %c0_i32 = arith.constant 0 : i32
    %c0_i32_0 = arith.constant 0 : i32
    return %arg1, %c0_i32, %arg0 : i32, i32, i32
  }
}

</mosaic_0001>

<llo_original>
// kernel: tpu_custom_call.1
$region0: #{tpu_custom_call.1}
  #allocation0 [shape = 'u32[]', space=smem, size = 0x4, offset = 0x4, fixed_abs, tag = 'smem constant byte address 0x4 - core index']
  #allocation1 [shape = 'u32[144,128]{1,0:T(1,128)}', space=vmem, size = 0x12000, scoped, tag = 'internal scratch']
  %s0 = inlined_call_operand.hbm [shape: bf16[2,32,256], index: 0, kind: input, shape index: {}]
  %s1 = inlined_call_operand.vmem [shape: bf16[80,32], index: 1, kind: input, shape index: {}]
  %s2 = inlined_call_operand.vmem [shape: f32[80,1], index: 2, kind: input, shape index: {}]
  %s3 = inlined_call_operand.vmem [shape: f32[56,256], index: 3, kind: input, shape index: {}]
  %s4 = inlined_call_operand.hbm [shape: f32[2,8,256], index: 4, kind: output, shape index: {0}]
  %s5 = inlined_call_operand.hbm [shape: f32[2,56,256], index: 5, kind: output, shape index: {1}]
  %6 = xla_tuple %s4, %s5
  %s7 = sld [smem:[#allocation0]]
  $region61: #{tpu_custom_call.1} parent=0
    _
  %s9 = ssub.s32 1, %s7
  %s10 = scalar_select 0, %s9, %s7
  $region1: #{tpu_custom_call.1} parent=0
    #allocation2 [shape = 'u8[32768]{0}', space=vmem, size = 0x8000, scoped, tag = 'input window, operand 0']
    #allocation3 [shape = 's32[2]{0}', space=sflag, size = 0x8, scoped, tag = 'scoped memory for tpu_custom_call.1']
    #allocation4 [shape = 's32[2]{0}', space=sflag, size = 0x8, scoped, tag = 'scoped memory for tpu_custom_call.1']
    #allocation5 [shape = 'u8[16384]{0}', space=vmem, size = 0x4000, scoped, tag = 'output window, operand 0']
    #allocation6 [shape = 'u8[114688]{0}', space=vmem, size = 0x1c000, scoped, tag = 'output window, operand 1']
    #allocation7 [shape = 's32[2]{0}', space=sflag, size = 0x8, scoped, tag = 'scoped memory for tpu_custom_call.1']
    %11 = vsyncpa [#allocation3], 0
    %s12 = scalar_lea.sflag [#allocation3], 1
    %13 = vsyncpa %s12, 0
    %14 = vsyncpa [#allocation4], 0
    %s15 = scalar_lea.sflag [#allocation4], 1
    %16 = vsyncpa %s15, 0
    %17 = vsyncpa [#allocation7], 0
    %s18 = scalar_lea.sflag [#allocation7], 1
    %19 = vsyncpa %s18, 0
    loop: start=0, step=1, limit=4
    $region2: #{tpu_custom_call.1} parent=1 // loop_pre_header
      _
    $region3: #{tpu_custom_call.1} parent=1 // loop_header
      %s21 = sphi 0, %s25
      %p22 = scmp.ge.s32.totalorder %s21, 4
      %s28 = sphi 0, %s40
      %s29 = sphi 0, %s36
      %s30 = sphi 0, %s28
      %s31 = sphi 0, %s29
      %s32 = sphi 0, %s30
      %s33 = sphi 0, %s31
      %s45 = sphi 0, %s47
      %s48 = sphi 0, %s45
      %s49 = sphi 0, %s48
      %s65 = sphi 0, %s49
      %s69 = sphi 0, %s69
      %s71 = sphi 0, %s69
      %s72 = sphi 0, %s71
      %s86 = sphi 0, %s72
      %s90 = sphi 0, %s90
      %s92 = sphi 0, %s90
      %s93 = sphi 0, %s92
      %s107 = sphi 0, %s93
      %s113 = sphi 0, %s115
      %s116 = sphi 0, %s113
      %s117 = sphi 0, %s116
      %s133 = sphi 0, %s117
      %s141 = sphi 0, %s143
      %s144 = sphi 0, %s141
      %s145 = sphi 0, %s144
      %s161 = sphi 0, %s145
      %s169 = sphi 0, %s171
      %s172 = sphi 0, %s169
      %s173 = sphi 0, %s172
      %s189 = sphi 0, %s173
    $region4: #{tpu_custom_call.1} parent=1 // loop_header_branch
      %24 = sbr.rel (%p22) target = $region8
    $region5: #{tpu_custom_call.1} parent=1 // loop_body
      %s26 = ssub.s32 %s21, 1
      %s27 = ssub.s32 %s21, 2
      %s34 = sadd.s32 1, %s29
      %p35 = scmp.ge.s32.totalorder %s34, 2
      %s36 = scalar_select %p35, 0, %s34
      %s37 = sadd.s32 1, %s28
      %s38 = scalar_select %p35, %s37, %s28
      %p39 = scmp.ge.s32.totalorder %s38, 1
      %s40 = scalar_select %p39, 0, %s38
      %s41 = ssub.s32 %s29, %s36
      %s42 = ssub.s32 %s28, %s40
      %s43 = sor.u32 %s41, %s42
      %p44 = scmp.eq.s32.totalorder %s43, 0
      %s46 = sadd.s32 %s45, 1
      %s47 = scalar_select %p44, %s45, %s46
      %p50 = pneg %p44
      %p51 = scmp.eq.s32.totalorder %s21, 1
      %p52 = por %p50, %p51
      %p53 = scmp.ne.s32.totalorder %s45, %s48
      %p54 = scmp.eq.s32.totalorder %s21, 0
      %p55 = por %p53, %p54
      %p56 = scmp.ne.s32.totalorder %s45, %s48
      %p57 = scmp.eq.s32.totalorder %s26, 1
      %p58 = por %p56, %p57
      %p59 = scmp.ne.s32.totalorder %s48, %s49
      %p60 = scmp.eq.s32.totalorder %s26, 0
      %p61 = por %p59, %p60
      %p62 = scmp.ne.s32.totalorder %s48, %s49
      %p63 = scmp.eq.s32.totalorder %s27, 1
      %p64 = por %p62, %p63
      %p66 = scmp.ne.s32.totalorder %s49, %s65
      %p67 = scmp.eq.s32.totalorder %s27, 0
      %p68 = por %p66, %p67
      %s70 = sadd.s32 %s69, 1
      %p73 = scmp.eq.s32.totalorder %s21, 1
      %p74 = scmp.ne.s32.totalorder %s69, %s71
      %p75 = scmp.eq.s32.totalorder %s21, 0
      %p76 = por %p74, %p75
      %p77 = scmp.ne.s32.totalorder %s69, %s71
      %p78 = scmp.eq.s32.totalorder %s26, 1
      %p79 = por %p77, %p78
      %p80 = scmp.ne.s32.totalorder %s71, %s72
      %p81 = scmp.eq.s32.totalorder %s26, 0
      %p82 = por %p80, %p81
      %p83 = scmp.ne.s32.totalorder %s71, %s72
      %p84 = scmp.eq.s32.totalorder %s27, 1
      %p85 = por %p83, %p84
      %p87 = scmp.ne.s32.totalorder %s72, %s86
      %p88 = scmp.eq.s32.totalorder %s27, 0
      %p89 = por %p87, %p88
      %s91 = sadd.s32 %s90, 1
      %p94 = scmp.eq.s32.totalorder %s21, 1
      %p95 = scmp.ne.s32.totalorder %s90, %s92
      %p96 = scmp.eq.s32.totalorder %s21, 0
      %p97 = por %p95, %p96
      %p98 = scmp.ne.s32.totalorder %s90, %s92
      %p99 = scmp.eq.s32.totalorder %s26, 1
      %p100 = por %p98, %p99
      %p101 = scmp.ne.s32.totalorder %s92, %s93
      %p102 = scmp.eq.s32.totalorder %s26, 0
      %p103 = por %p101, %p102
      %p104 = scmp.ne.s32.totalorder %s92, %s93
      %p105 = scmp.eq.s32.totalorder %s27, 1
      %p106 = por %p104, %p105
      %p108 = scmp.ne.s32.totalorder %s93, %s107
      %p109 = scmp.eq.s32.totalorder %s27, 0
      %p110 = por %p108, %p109
      %s111 = ssub.s32 %s28, %s40
      %p112 = scmp.eq.s32.totalorder %s111, 0
      %s114 = sadd.s32 %s113, 1
      %s115 = scalar_select %p112, %s113, %s114
      %p118 = pneg %p112
      %p119 = scmp.eq.s32.totalorder %s21, 1
      %p120 = por %p118, %p119
      %p121 = scmp.ne.s32.totalorder %s113, %s116
      %p122 = scmp.eq.s32.totalorder %s21, 0
      %p123 = por %p121, %p122
      %p124 = scmp.ne.s32.totalorder %s113, %s116
      %p125 = scmp.eq.s32.totalorder %s26, 1
      %p126 = por %p124, %p125
      %p127 = scmp.ne.s32.totalorder %s116, %s117
      %p128 = scmp.eq.s32.totalorder %s26, 0
      %p129 = por %p127, %p128
      %p130 = scmp.ne.s32.totalorder %s116, %s117
      %p131 = scmp.eq.s32.totalorder %s27, 1
      %p132 = por %p130, %p131
      %p134 = scmp.ne.s32.totalorder %s117, %s133
      %p135 = scmp.eq.s32.totalorder %s27, 0
      %p136 = por %p134, %p135
      %s137 = ssub.s32 %s29, %s36
      %s138 = ssub.s32 %s28, %s40
      %s139 = sor.u32 %s137, %s138
      %p140 = scmp.eq.s32.totalorder %s139, 0
      %s142 = sadd.s32 %s141, 1
      %s143 = scalar_select %p140, %s141, %s142
      %p146 = pneg %p140
      %p147 = scmp.eq.s32.totalorder %s21, 1
      %p148 = por %p146, %p147
      %p149 = scmp.ne.s32.totalorder %s141, %s144
      %p150 = scmp.eq.s32.totalorder %s21, 0
      %p151 = por %p149, %p150
      %p152 = scmp.ne.s32.totalorder %s141, %s144
      %p153 = scmp.eq.s32.totalorder %s26, 1
      %p154 = por %p152, %p153
      %p155 = scmp.ne.s32.totalorder %s144, %s145
      %p156 = scmp.eq.s32.totalorder %s26, 0
      %p157 = por %p155, %p156
      %p158 = scmp.ne.s32.totalorder %s144, %s145
      %p159 = scmp.eq.s32.totalorder %s27, 1
      %p160 = por %p158, %p159
      %p162 = scmp.ne.s32.totalorder %s145, %s161
      %p163 = scmp.eq.s32.totalorder %s27, 0
      %p164 = por %p162, %p163
      %s165 = ssub.s32 %s29, %s36
      %s166 = ssub.s32 %s28, %s40
      %s167 = sor.u32 %s165, %s166
      %p168 = scmp.eq.s32.totalorder %s167, 0
      %s170 = sadd.s32 %s169, 1
      %s171 = scalar_select %p168, %s169, %s170
      %p174 = pneg %p168
      %p175 = scmp.eq.s32.totalorder %s21, 1
      %p176 = por %p174, %p175
      %p177 = scmp.ne.s32.totalorder %s169, %s172
      %p178 = scmp.eq.s32.totalorder %s21, 0
      %p179 = por %p177, %p178
      %p180 = scmp.ne.s32.totalorder %s169, %s172
      %p181 = scmp.eq.s32.totalorder %s26, 1
      %p182 = por %p180, %p181
      %p183 = scmp.ne.s32.totalorder %s172, %s173
      %p184 = scmp.eq.s32.totalorder %s26, 0
      %p185 = por %p183, %p184
      %p186 = scmp.ne.s32.totalorder %s172, %s173
      %p187 = scmp.eq.s32.totalorder %s27, 1
      %p188 = por %p186, %p187
      %p190 = scmp.ne.s32.totalorder %s173, %s189
      %p191 = scmp.eq.s32.totalorder %s27, 0
      %p192 = por %p190, %p191
      %p193 = scmp.le.s32.totalorder 1, %s21
      %p194 = scmp.lt.s32.totalorder %s21, 3
      %p195 = pnand %p193, %p194
      %p196 = pneg %p195
      // Predicated region
      $region9: #{tpu_custom_call.1} parent=5 // pred_check
        _
      $region10: #{tpu_custom_call.1} parent=5 // pred_check_branch
        %198 = sbr.rel (%p195) target = $region12
      $region11: #{tpu_custom_call.1} parent=5 // pred_region
        %s199 = ssub.s32 %s21, 1
        // Predicated region
        $region13: #{tpu_custom_call.1} parent=11 // pred_check
          %p200 = pneg %p82
        $region14: #{tpu_custom_call.1} parent=11 // pred_check_branch
          %202 = sbr.rel (%p200) target = $region16
        $region15: #{tpu_custom_call.1} parent=11 // pred_region
          _
        $region16: #{tpu_custom_call.1} parent=11 // pred_fallthru
          _
        // Predicated region
        $region17: #{tpu_custom_call.1} parent=11 // pred_check
          %p203 = pneg %p103
        $region18: #{tpu_custom_call.1} parent=11 // pred_check_branch
          %205 = sbr.rel (%p203) target = $region20
        $region19: #{tpu_custom_call.1} parent=11 // pred_region
          _
        $region20: #{tpu_custom_call.1} parent=11 // pred_fallthru
          _
        // Predicated region
        $region21: #{tpu_custom_call.1} parent=11 // pred_check
          %p206 = pneg %p129
        $region22: #{tpu_custom_call.1} parent=11 // pred_check_branch
          %208 = sbr.rel (%p206) target = $region24
        $region23: #{tpu_custom_call.1} parent=11 // pred_region
          %s209 = smul.u32 2, %s30
          %p210 = scmp.lt.s32.totalorder %s209, 1
          %s211 = scalar_select %p210, %s209, 1
          %s212 = smul.addr %s211, 8
          %s213 = scalar_lea.vmem %s3, %s212
          %s214 = smul.u32 2, %s30
        $region24: #{tpu_custom_call.1} parent=11 // pred_fallthru
          _
      $region12: #{tpu_custom_call.1} parent=5 // pred_fallthru
        _
      %p215 = scmp.lt.s32.totalorder %s21, 2
      // Predicated region
      $region25: #{tpu_custom_call.1} parent=5 // pred_check
        %p216 = pneg %p215
      $region26: #{tpu_custom_call.1} parent=5 // pred_check_branch
        %218 = sbr.rel (%p216) target = $region28
      $region27: #{tpu_custom_call.1} parent=5 // pred_region
        // Predicated region
        $region29: #{tpu_custom_call.1} parent=27 // pred_check
          %p219 = pneg %p55
        $region30: #{tpu_custom_call.1} parent=27 // pred_check_branch
          %221 = sbr.rel (%p219) target = $region32
        $region31: #{tpu_custom_call.1} parent=27 // pred_region
          %s222 = sand.u32 %s45, 1
          %s223 = scalar_lea.sflag [#allocation3], %s222
          %s224 = sand.u32 %s45, 1
          %s225 = smul.addr %s224, 32
          %s226 = scalar_lea.vmem [#allocation2], %s225
          %s227 = smul.u32 2, %s28
          %s229 = ssub.s32 512, 512
          %230 = vsyncadd %s223, %s229
          %s231 = smul.addr %s29, 8
          %s232 = sadd.s32 %s227, %s231
          %s233 = smul.addr %s232, 64
          %s234 = scalar_lea.hbm %s0, %s233
          %s235 = sshll.u32 %s226, 4
          %s236 = int_to_ptr.vmem [resolvable:$true] %s235
          %241 = dma.hbm_to_vmem [thread:$0]  %s234, 512, %s236, %s223, 128, 128, 8
        $region32: #{tpu_custom_call.1} parent=27 // pred_fallthru
          _
      $region28: #{tpu_custom_call.1} parent=5 // pred_fallthru
        _
      %p242 = scmp.le.s32.totalorder 1, %s21
      %p243 = scmp.lt.s32.totalorder %s21, 3
      %p244 = pnand %p242, %p243
      %p245 = pneg %p244
      // Predicated region
      $region33: #{tpu_custom_call.1} parent=5 // pred_check
        _
      $region34: #{tpu_custom_call.1} parent=5 // pred_check_branch
        %247 = sbr.rel (%p244) target = $region36
      $region35: #{tpu_custom_call.1} parent=5 // pred_region
        %s248 = ssub.s32 %s21, 1
        %s249 = sand.u32 %s48, 1
        %s250 = scalar_lea.sflag [#allocation3], %s249
        %s251 = sand.u32 %s48, 1
        %s252 = smul.addr %s251, 32
        %s253 = scalar_lea.vmem [#allocation2], %s252
        // Predicated region
        $region37: #{tpu_custom_call.1} parent=35 // pred_check
          %p254 = pneg %p61
        $region38: #{tpu_custom_call.1} parent=35 // pred_check_branch
          %256 = sbr.rel (%p254) target = $region40
        $region39: #{tpu_custom_call.1} parent=35 // pred_region
          %257 = dma.done %s250, 512
        $region40: #{tpu_custom_call.1} parent=35 // pred_fallthru
          _
        %s258 = sand.u32 %s48, 1
        %s259 = scalar_lea.sflag [#allocation3], %s258
        %s260 = sand.u32 %s48, 1
        %s261 = smul.addr %s260, 32
        %s262 = scalar_lea.vmem [#allocation2], %s261
        %p263 = pneg %p61
        %p264 = pneg %p58
        %p265 = pneg %p82
        %p266 = pneg %p79
        %p267 = pneg %p103
        %p268 = pneg %p100
        %s269 = smul.u32 2, %s30
        %p270 = scmp.lt.s32.totalorder %s269, 1
        %s271 = scalar_select %p270, %s269, 1
        %s272 = smul.addr %s271, 8
        %s273 = scalar_lea.vmem %s3, %s272
        %p274 = pneg %p129
        %p275 = pneg %p126
        %p276 = pneg %p157
        %p277 = pneg %p154
        %s278 = sand.u32 %s144, 1
        %s279 = scalar_lea.sflag [#allocation4], %s278
        %s280 = sand.u32 %s144, 1
        %s281 = smul.addr %s280, 16
        %s282 = scalar_lea.vmem [#allocation5], %s281
        %p283 = pneg %p185
        %p284 = pneg %p182
        %s285 = sand.u32 %s172, 1
        %s286 = scalar_lea.sflag [#allocation7], %s285
        %s287 = sand.u32 %s172, 1
        %s288 = smul.addr %s287, 112
        %s289 = scalar_lea.vmem [#allocation6], %s288
        %s290 = smul.u32 2, %s30
        %s291 = smul.u32 2, %s30
        %p292 = scmp.lt.s32.totalorder %s291, 1
        %s293 = scalar_select %p292, %s291, 1
        %s294 = smul.addr %s293, 8
        %s295 = scalar_lea.vmem %s3, %s294
        %s296 = smul.u32 2, %s30
        %s297 = smul.u32 2, %s30
        %s298 = smul.u32 2, %s30
        %v300 = vld [vmem:[%s253] sm:$0xff]
        %v301 = vld [vmem:[%s253 + $0x8] sm:$0xff]
        %v302 = vld [vmem:[%s253 + $0x10] sm:$0xff]
        %v303 = vld [vmem:[%s253 + $0x18] sm:$0xff]
        %v304 = vld [vmem:[%s1] sm:$0xf]
        %v305 = vld [vmem:[%s1 + $0x4] sm:$0xf]
        %v306 = vld [vmem:[%s1 + $0x8] sm:$0xf]
        %v307 = vld [vmem:[%s1 + $0xc] sm:$0xf]
        %v308 = vld [vmem:[%s1 + $0x10] sm:$0xf]
        %v309 = vld [vmem:[%s1 + $0x14] sm:$0xf]
        %v310 = vld [vmem:[%s1 + $0x18] sm:$0xf]
        %v311 = vld [vmem:[%s1 + $0x1c] sm:$0xf]
        %v312 = vld [vmem:[%s1 + $0x20] sm:$0xf]
        %v313 = vld [vmem:[%s1 + $0x24] sm:$0xf]
        %v314 = vld [vmem:[%s2] sm:$0xff]
        %v315 = vld [vmem:[%s2 + $0x8] sm:$0xff]
        %v316 = vld [vmem:[%s2 + $0x10] sm:$0xff]
        %v317 = vld [vmem:[%s2 + $0x18] sm:$0xff]
        %v318 = vld [vmem:[%s2 + $0x20] sm:$0xff]
        %v319 = vld [vmem:[%s2 + $0x28] sm:$0xff]
        %v320 = vld [vmem:[%s2 + $0x30] sm:$0xff]
        %v321 = vld [vmem:[%s2 + $0x38] sm:$0xff]
        %v322 = vld [vmem:[%s2 + $0x40] sm:$0xff]
        %v323 = vld [vmem:[%s2 + $0x48] sm:$0xff]
        %325 = vset.pattern.permute.xlu0 0
        %326 = vperm.xlu0 %325, %v314
        %v327 = vpop.permute.xlu0 %326
        %330 = vset.pattern.permute.xlu0 0
        %331 = vperm.xlu0 %330, %v315
        %v332 = vpop.permute.xlu0 %331
        %335 = vset.pattern.permute.xlu0 0
        %336 = vperm.xlu0 %335, %v316
        %v337 = vpop.permute.xlu0 %336
        %340 = vset.pattern.permute.xlu0 0
        %341 = vperm.xlu0 %340, %v317
        %v342 = vpop.permute.xlu0 %341
        %345 = vset.pattern.permute.xlu0 0
        %346 = vperm.xlu0 %345, %v318
        %v347 = vpop.permute.xlu0 %346
        %350 = vset.pattern.permute.xlu0 0
        %351 = vperm.xlu0 %350, %v319
        %v352 = vpop.permute.xlu0 %351
        %355 = vset.pattern.permute.xlu0 0
        %356 = vperm.xlu0 %355, %v320
        %v357 = vpop.permute.xlu0 %356
        %360 = vset.pattern.permute.xlu0 0
        %361 = vperm.xlu0 %360, %v321
        %v362 = vpop.permute.xlu0 %361
        %365 = vset.pattern.permute.xlu0 0
        %366 = vperm.xlu0 %365, %v322
        %v367 = vpop.permute.xlu0 %366
        %370 = vset.pattern.permute.xlu0 0
        %371 = vperm.xlu0 %370, %v323
        %v372 = vpop.permute.xlu0 %371
        %v384 = vunpack.c.l.b16 %v304
        %v385 = vunpack.c.l.b16 %v305
        %v386 = vunpack.c.l.b16 %v306
        %v387 = vunpack.c.l.b16 %v307
        %v388 = vunpack.c.l.b16 %v308
        %v389 = vunpack.c.l.b16 %v309
        %v390 = vunpack.c.l.b16 %v310
        %v391 = vunpack.c.l.b16 %v311
        %v392 = vunpack.c.l.b16 %v312
        %v393 = vunpack.c.l.b16 %v313
        %v394 = vpack.c.b16 %v385, %v384
        %v395 = vpack.c.b16 %v387, %v386
        %v396 = vpack.c.b16 %v389, %v388
        %v397 = vpack.c.b16 %v391, %v390
        %v398 = vpack.c.b16 %v393, %v392
        %v403 = vunpack.c.l.b16 %v300
        %v404 = vunpack.c.h.b16 %v300
        %v405 = vunpack.c.l.b16 %v301
        %v406 = vunpack.c.h.b16 %v301
        %v407 = vunpack.c.l.b16 %v302
        %v408 = vunpack.c.h.b16 %v302
        %v409 = vunpack.c.l.b16 %v303
        %v410 = vunpack.c.h.b16 %v303
        %v411 = vpack.c.b16 %v405, %v403
        %v412 = vpack.c.b16 %v406, %v404
        %v413 = vpack.c.b16 %v409, %v407
        %v414 = vpack.c.b16 %v410, %v408
        %vm419 = vcmask 261120
        %v421 = vsel %vm419, %v394, 0
        %v424 = vsel %vm419, %v395, 0
        %v427 = vsel %vm419, %v396, 0
        %v430 = vsel %vm419, %v397, 0
        %v433 = vsel %vm419, %v398, 0
        %435 = vmatprep.subr.bf16.mxu0 %v412
        %436 = vmatpush1.bf16.msra.mxu0 %v411
        %437 = vmatprep.subr.bf16.mxu0 %v414
        %438 = vmatpush1.bf16.msra.mxu0 %v413
        %439 = vmatprep.subr.bf16.mxu0 0
        %440 = vmatpush1.bf16.msra.mxu0 0
        %441 = vmatprep.subr.bf16.mxu0 0
        %442 = vmatpush1.bf16.msra.mxu0 0
        %443 = vmatprep.subr.bf16.mxu0 0
        %444 = vmatpush1.bf16.msra.mxu0 0
        %445 = vmatprep.subr.bf16.mxu0 0
        %446 = vmatpush1.bf16.msra.mxu0 0
        %447 = vmatprep.subr.bf16.mxu0 0
        %448 = vmatpush1.bf16.msra.mxu0 0
        %449 = vmatprep.subr.bf16.mxu0 0
        %450 = vmatpush1.bf16.msra.mxu0 0
        %451 = vmatprep.subr.bf16.mxu0 0
        %452 = vmatpush1.bf16.msra.mxu0 0
        %453 = vmatprep.subr.bf16.mxu0 0
        %454 = vmatpush1.bf16.msra.mxu0 0
        %455 = vmatprep.subr.bf16.mxu0 0
        %456 = vmatpush1.bf16.msra.mxu0 0
        %457 = vmatprep.subr.bf16.mxu0 0
        %458 = vmatpush1.bf16.msra.mxu0 0
        %459 = vmatprep.subr.bf16.mxu0 0
        %460 = vmatpush1.bf16.msra.mxu0 0
        %461 = vmatprep.subr.bf16.mxu0 0
        %462 = vmatpush1.bf16.msra.mxu0 0
        %463 = vmatprep.subr.bf16.mxu0 0
        %464 = vmatpush1.bf16.msra.mxu0 0
        %465 = vmatprep.subr.bf16.mxu0 0
        %466 = vmatpush1.bf16.msra.mxu0 0
        %467 = vmatprep.mubr.bf16.mxu0 0
        %468 = vmatmul.mubr.bf16.gmra.mrb[0].mxu0 %v421
        %v469 = vpop.f32.mrb[0].mxu0
        %v470 = vadd.f32 %v327, %v469
        %v471 = vpop.f32.mrb[0].mxu0
        %v472 = vadd.f32 %v327, %v471
        %v473 = vpop.f32.mrb[0].mxu0
        %v474 = vadd.f32 %v332, %v473
        %v475 = vpop.f32.mrb[0].mxu0
        %v476 = vadd.f32 %v332, %v475
        %477 = vmatprep.mubr.bf16.mxu0 0
        %478 = vmatmul.mubr.bf16.gmra.mrb[0].mxu0 %v424
        %v479 = vpop.f32.mrb[0].mxu0
        %v480 = vadd.f32 %v337, %v479
        %v481 = vpop.f32.mrb[0].mxu0
        %v482 = vadd.f32 %v337, %v481
        %v483 = vpop.f32.mrb[0].mxu0
        %v484 = vadd.f32 %v342, %v483
        %v485 = vpop.f32.mrb[0].mxu0
        %v486 = vadd.f32 %v342, %v485
        %487 = vmatprep.mubr.bf16.mxu0 0
        %488 = vmatmul.mubr.bf16.gmra.mrb[0].mxu0 %v427
        %v489 = vpop.f32.mrb[0].mxu0
        %v490 = vadd.f32 %v347, %v489
        %v491 = vpop.f32.mrb[0].mxu0
        %v492 = vadd.f32 %v347, %v491
        %v493 = vpop.f32.mrb[0].mxu0
        %v494 = vadd.f32 %v352, %v493
        %v495 = vpop.f32.mrb[0].mxu0
        %v496 = vadd.f32 %v352, %v495
        %497 = vmatprep.mubr.bf16.mxu0 0
        %498 = vmatmul.mubr.bf16.gmra.mrb[0].mxu0 %v430
        %v499 = vpop.f32.mrb[0].mxu0
        %v500 = vadd.f32 %v357, %v499
        %v501 = vpop.f32.mrb[0].mxu0
        %v502 = vadd.f32 %v357, %v501
        %v503 = vpop.f32.mrb[0].mxu0
        %v504 = vadd.f32 %v362, %v503
        %v505 = vpop.f32.mrb[0].mxu0
        %v506 = vadd.f32 %v362, %v505
        %507 = vmatprep.mubr.bf16.mxu0 0
        %508 = vmatmul.mubr.bf16.gmra.mrb[0].mxu0 %v433
        %v509 = vpop.f32.mrb[0].mxu0
        %v510 = vadd.f32 %v367, %v509
        %v511 = vpop.f32.mrb[0].mxu0
        %v512 = vadd.f32 %v367, %v511
        %v513 = vpop.f32.mrb[0].mxu0
        %v514 = vadd.f32 %v372, %v513
        %v515 = vpop.f32.mrb[0].mxu0
        %v516 = vadd.f32 %v372, %v515
        %517 = vdwg.mxu0
        %518 = vst [vmem:[%s282] sm:$0xff] %v470
        %519 = vst [vmem:[%s282 + $0x8] sm:$0xff] %v472
        %v520 = vld [vmem:[%s295] sm:$0xff]
        %v521 = vld [vmem:[%s295 + $0x8] sm:$0xff]
        %v522 = vld [vmem:[%s295 + $0x10] sm:$0xff]
        %v523 = vld [vmem:[%s295 + $0x18] sm:$0xff]
        %v524 = vld [vmem:[%s295 + $0x20] sm:$0xff]
        %v525 = vld [vmem:[%s295 + $0x28] sm:$0xff]
        %v526 = vld [vmem:[%s295 + $0x30] sm:$0xff]
        %v527 = vld [vmem:[%s295 + $0x38] sm:$0xff]
        %v528 = vld [vmem:[%s295 + $0x40] sm:$0xff]
        %v529 = vld [vmem:[%s295 + $0x48] sm:$0xff]
        %v530 = vld [vmem:[%s295 + $0x50] sm:$0xff]
        %v531 = vld [vmem:[%s295 + $0x58] sm:$0xff]
        %v532 = vld [vmem:[%s295 + $0x60] sm:$0xff]
        %v533 = vld [vmem:[%s295 + $0x68] sm:$0xff]
        %v534 = vmul.f32 %v526, %v526
        %v535 = vmul.f32 %v527, %v527
        %v536 = vmul.f32 %v528, %v528
        %v537 = vmul.f32 %v529, %v529
        %v538 = vadd.f32 %v534, %v536
        %v539 = vadd.f32 %v535, %v537
        %v540 = vrsqrt.pop %v538
        %v541 = vmul.f32 %v538, %v540
        %vm542 = vcmp.eq.f32.partialorder %v538, inf
        %v543 = vsel %vm542, %v538, %v541
        %vm544 = vcmp.eq.f32.partialorder %v538, 0.0
        %v545 = vand.u32 %v538, 2147483648
        %v546 = vsel %vm544, %v545, %v543
        %v547 = vrsqrt.pop %v539
        %v548 = vmul.f32 %v539, %v547
        %vm549 = vcmp.eq.f32.partialorder %v539, inf
        %v550 = vsel %vm549, %v539, %v548
        %vm551 = vcmp.eq.f32.partialorder %v539, 0.0
        %v552 = vand.u32 %v539, 2147483648
        %v553 = vsel %vm551, %v552, %v550
        %v554 = vmul.f32 %v474, %v546
        %v555 = vmul.f32 %v476, %v553
        %v556 = vadd.f32 %v554, %v520
        %v557 = vadd.f32 %v555, %v521
        %v558 = vmul.f32 %v480, %v546
        %v559 = vmul.f32 %v482, %v553
        %v560 = vadd.f32 %v558, %v522
        %v561 = vadd.f32 %v559, %v523
        %v562 = vmul.f32 %v484, %v530
        %v563 = vmul.f32 %v486, %v531
        %v564 = vadd.f32 %v562, %v524
        %v565 = vadd.f32 %v563, %v525
        %v566 = vmul.f32 %v490, 1.442695
        %v567 = vpow.pop %v566
        %v568 = vmul.f32 %v492, 1.442695
        %v569 = vpow.pop %v568
        %v570 = vmul.f32 %v567, %v526
        %v571 = vmul.f32 %v569, %v527
        %v572 = vmul.f32 %v494, 1.442695
        %v573 = vpow.pop %v572
        %v574 = vmul.f32 %v496, 1.442695
        %v575 = vpow.pop %v574
        %v576 = vmul.f32 %v573, %v528
        %v577 = vmul.f32 %v575, %v529
        %v578 = vmul.f32 %v500, 1.442695
        %v579 = vpow.pop %v578
        %v580 = vmul.f32 %v502, 1.442695
        %v581 = vpow.pop %v580
        %v582 = vmul.f32 %v579, %v530
        %v583 = vmul.f32 %v581, %v531
        %v584 = vadd.f32 %v504, %v532
        %v585 = vadd.f32 %v506, %v533
        %vm586 = vcmp.gt.f32.partialorder %v514, %v510
        %vm587 = vcmp.gt.f32.partialorder %v516, %v512
        %v588 = vsel %vm586, 1.0, 0.0
        %v589 = vsel %vm587, 1.0, 0.0
        %v590 = vsub.f32 %v584, 0.78539
        %v591 = vsub.f32 %v585, 0.78539
        %v592 = vmul.f32 %v590, 0.31830987
        %v593 = vmul.f32 %v591, 0.31830987
        %v594 = vadd.f32 %v592, 0.0
        %v595 = vadd.f32 %v593, 0.0
        %v596 = vfloor.f32 %v594
        %v597 = vfloor.f32 %v595
        %v598 = vmul.f32 %v596, 3.1415927
        %v599 = vmul.f32 %v597, 3.1415927
        %v600 = vsub.f32 %v590, %v598
        %v601 = vsub.f32 %v591, %v599
        %v602 = vadd.f32 %v600, 0.78539
        %v603 = vadd.f32 %v601, 0.78539
        %v604 = vmul.f32 %v588, 3.1415927
        %v605 = vmul.f32 %v589, 3.1415927
        %v606 = vadd.f32 %v602, %v604
        %v607 = vadd.f32 %v603, %v605
        %608 = vst [vmem:[%s289] sm:$0xff] %v556
        %609 = vst [vmem:[%s289 + $0x8] sm:$0xff] %v557
        %610 = vst [vmem:[%s289 + $0x10] sm:$0xff] %v560
        %611 = vst [vmem:[%s289 + $0x18] sm:$0xff] %v561
        %612 = vst [vmem:[%s289 + $0x20] sm:$0xff] %v564
        %613 = vst [vmem:[%s289 + $0x28] sm:$0xff] %v565
        %614 = vst [vmem:[%s289 + $0x30] sm:$0xff] %v570
        %615 = vst [vmem:[%s289 + $0x38] sm:$0xff] %v571
        %616 = vst [vmem:[%s289 + $0x40] sm:$0xff] %v576
        %617 = vst [vmem:[%s289 + $0x48] sm:$0xff] %v577
        %618 = vst [vmem:[%s289 + $0x50] sm:$0xff] %v582
        %619 = vst [vmem:[%s289 + $0x58] sm:$0xff] %v583
        %620 = vst [vmem:[%s289 + $0x60] sm:$0xff] %v606
        %621 = vst [vmem:[%s289 + $0x68] sm:$0xff] %v607
        %s622 = sand.u32 %s144, 1
        %s623 = scalar_lea.sflag [#allocation4], %s622
        %s624 = sand.u32 %s144, 1
        %s625 = smul.addr %s624, 16
        %s626 = scalar_lea.vmem [#allocation5], %s625
        %s627 = sand.u32 %s172, 1
        %s628 = scalar_lea.sflag [#allocation7], %s627
        %s629 = sand.u32 %s172, 1
        %s630 = smul.addr %s629, 112
        %s631 = scalar_lea.vmem [#allocation6], %s630
        // Predicated region
        $region41: #{tpu_custom_call.1} parent=35 // pred_check
          %p632 = pneg %p154
        $region42: #{tpu_custom_call.1} parent=35 // pred_check_branch
          %634 = sbr.rel (%p632) target = $region44
        $region43: #{tpu_custom_call.1} parent=35 // pred_region
          %s635 = smul.u32 2, %s30
          %s637 = ssub.s32 256, 256
          %638 = vsyncadd %s623, %s637
          %s639 = smul.addr %s31, 2
          %s640 = sadd.s32 %s635, %s639
          %s641 = smul.addr %s640, 128
          %s642 = scalar_lea.hbm %s4, %s641
          %s644 = sshll.u32 %s626, 4
          %s645 = int_to_ptr.vmem [resolvable:$true] %s644
          %647 = dma.vmem_to_hbm [thread:$0]  %s645, 256, %s642, %s623
        $region44: #{tpu_custom_call.1} parent=35 // pred_fallthru
          _
        // Predicated region
        $region45: #{tpu_custom_call.1} parent=35 // pred_check
          %p648 = pneg %p182
        $region46: #{tpu_custom_call.1} parent=35 // pred_check_branch
          %650 = sbr.rel (%p648) target = $region48
        $region47: #{tpu_custom_call.1} parent=35 // pred_region
          %s651 = smul.u32 2, %s30
          %s653 = ssub.s32 1792, 1792
          %654 = vsyncadd %s628, %s653
          %s655 = smul.addr %s31, 14
          %s656 = sadd.s32 %s651, %s655
          %s657 = smul.addr %s656, 128
          %s658 = scalar_lea.hbm %s5, %s657
          %s659 = sshll.u32 %s631, 4
          %s660 = int_to_ptr.vmem [resolvable:$true] %s659
          %665 = dma.vmem_to_hbm [thread:$0]  %s660, 1792, %s658, %s628, 256, 256, 16
        $region48: #{tpu_custom_call.1} parent=35 // pred_fallthru
          _
      $region36: #{tpu_custom_call.1} parent=5 // pred_fallthru
        _
      %p666 = scmp.le.s32.totalorder 2, %s21
      // Predicated region
      $region49: #{tpu_custom_call.1} parent=5 // pred_check
        %p667 = pneg %p666
      $region50: #{tpu_custom_call.1} parent=5 // pred_check_branch
        %669 = sbr.rel (%p667) target = $region52
      $region51: #{tpu_custom_call.1} parent=5 // pred_region
        %s670 = ssub.s32 %s21, 2
        // Predicated region
        $region53: #{tpu_custom_call.1} parent=51 // pred_check
          %p671 = pneg %p160
        $region54: #{tpu_custom_call.1} parent=51 // pred_check_branch
          %673 = sbr.rel (%p671) target = $region56
        $region55: #{tpu_custom_call.1} parent=51 // pred_region
          %s674 = sand.u32 %s145, 1
          %s675 = scalar_lea.sflag [#allocation4], %s674
          %s676 = sand.u32 %s145, 1
          %s677 = smul.addr %s676, 16
          %s678 = scalar_lea.vmem [#allocation5], %s677
          %679 = dma.done %s675, 256
        $region56: #{tpu_custom_call.1} parent=51 // pred_fallthru
          _
        // Predicated region
        $region57: #{tpu_custom_call.1} parent=51 // pred_check
          %p680 = pneg %p188
        $region58: #{tpu_custom_call.1} parent=51 // pred_check_branch
          %682 = sbr.rel (%p680) target = $region60
        $region59: #{tpu_custom_call.1} parent=51 // pred_region
          %s683 = sand.u32 %s173, 1
          %s684 = scalar_lea.sflag [#allocation7], %s683
          %s685 = sand.u32 %s173, 1
          %s686 = smul.addr %s685, 112
          %s687 = scalar_lea.vmem [#allocation6], %s686
          %688 = dma.done %s684, 1792
        $region60: #{tpu_custom_call.1} parent=51 // pred_fallthru
          _
      $region52: #{tpu_custom_call.1} parent=5 // pred_fallthru
        _
    $region6: #{tpu_custom_call.1} parent=1 // loop_footer
      %s25 = sadd.s32 1, %s21
    $region7: #{tpu_custom_call.1} parent=1 // loop_footer_branch
      %20 = sbr.rel target = $region3
    $region8: #{tpu_custom_call.1} parent=1 // loop_exit
      _
    %689 = vsyncpa [#allocation3], 1
    %s690 = scalar_lea.sflag [#allocation3], 1
    %691 = vsyncpa %s690, 1
    %692 = vsyncpa [#allocation4], 1
    %s693 = scalar_lea.sflag [#allocation4], 1
    %694 = vsyncpa %s693, 1
    %695 = vsyncpa [#allocation7], 1
    %s696 = scalar_lea.sflag [#allocation7], 1
    %697 = vsyncpa %s696, 1

</llo_original>
